<compile_context>
chip_gen: v7x
topology: tpu7x:2x2x1
jax: 0.10.0
libtpu: 0.0.40
codegen_flags: <defaults>
</compile_context>

<pallas_src>
import functools

import jax
import jax.numpy as jnp
from jax.experimental import pallas as pl
from jax.experimental.pallas import tpu as pltpu

D_MODEL = 27                      # d_model
OUT_CH = 128                      # conv1 out_channels == tgt_len
PATCH = 9                         # kernel_size = patch_size**2
STRIDE = 10
IN_CH = 3
OH = OW = 3                       # conv output spatial (required by .reshape(...,27))
NPOS = OH * OW                    # 9 unique conv spatial positions per sample
REP = D_MODEL // NPOS             # 3: the expand(3, ...) duplication factor
KCOLS = IN_CH * PATCH * PATCH     # 243 = flattened patch length
KAUG = KCOLS + 1                  # 244: ones column folds the bias into the GEMM
SEQ_OUT = OUT_CH + 1              # 129 rows after the cls-token concat
CROP = (OH - 1) * STRIDE + PATCH  # 29: image rows/cols the conv actually reads


def _round_up(a, m):
    return (a + m - 1) // m * m


def direction_encode_kernel(p_ref, x_ref, w_ref, o_ref):
    # p_ref: (B*9, 244)    bf16  dedup'd im2col patches (+ ones column for bias)
    # x_ref: (3, B*9, 128) f32   residual, dup axis leading: x_ref[e, b*9+p, o]
    # w_ref: (244, 128)    bf16  conv weight^T, bias as the last K row (resident)
    # o_ref: (3, B*9, 128) f32   same packing as x_ref
    conv = jnp.dot(p_ref[...], w_ref[...],
                   preferred_element_type=jnp.float32)        # (B*9, 128) on MXU
    # expand(3, ...) == replicate across the leading dup axis; three dense
    # 128-lane adds + stores (static unroll -> plain 2-D vector ops).
    for e in range(REP):
        o_ref[e, :, :] = (conv + x_ref[e, :, :]).astype(o_ref.dtype)


@functools.partial(jax.jit, static_argnames=("block_b",))
def direction_encode(x, x1, img, w, b, *, block_b=64):
    del x1  # unused by the reference forward as well
    N = img.shape[0]
    xr = x.reshape(-1, x.shape[1], D_MODEL)                    # (N, 128, 27)

    # ---- im2col, dedup'd to the 9 unique patch columns (one pad+reshape) ----
    # stride=10 / k=9 patches at rows {0,10,20}: crop to 29, pad to 30, tile.
    imgc = img[:, :, :CROP, :CROP]
    imgp = jnp.pad(imgc, ((0, 0), (0, 0), (0, 1), (0, 1)))     # (N, 3, 30, 30)
    p6 = imgp.reshape(N, IN_CH, OH, STRIDE, OW, STRIDE)[:, :, :, :PATCH, :, :PATCH]
    p6 = jnp.transpose(p6, (0, 2, 4, 1, 3, 5))                 # (N, h', w', C, kh, kw)
    patches = p6.reshape(N * NPOS, KCOLS)                      # row = n*9 + h'*3 + w'
    patches = jnp.concatenate(                                 # bias-fold ones column
        [patches, jnp.ones((N * NPOS, 1), patches.dtype)], axis=-1)   # (N*9, 244)

    # conv weight^T with the bias folded in as the extra K row.
    wb = jnp.concatenate([w.reshape(OUT_CH, KCOLS), b[:, None]], axis=1).T  # (244, 128)

    # x packed so the dup axis is leading: xp[e, n*9+p, o] = x[n, o, 3p+e]
    # (reshape column k = h'*9 + w'*3 + e  <=>  k = 3*(h'*3+w') + e = 3p + e).
    xp = xr.reshape(N, OUT_CH, NPOS, REP).transpose(3, 0, 2, 1)
    xp = xp.reshape(REP, N * NPOS, OUT_CH)                     # (3, N*9, 128)

    # ---- batch padding: B samples per grid step; B multiple of 16 keeps the
    # bf16 patches block sublane count (B*9) a multiple of the (16,128) tile --
    bb = _round_up(min(block_b, N), 16)                        # samples per step
    n_pad = _round_up(N, bb)
    if n_pad != N:
        patches = jnp.pad(patches, ((0, (n_pad - N) * NPOS), (0, 0)))
        xp = jnp.pad(xp, ((0, 0), (0, (n_pad - N) * NPOS), (0, 0)))

    patches = patches.astype(jnp.bfloat16)                     # bf16 MXU operands
    wb = wb.astype(jnp.bfloat16)
    rows = bb * NPOS                                           # sublanes per block

    # TODO(synk): on v7x, pick bb so n_pad // bb >= 2 (even) to feed both TCs.
    out_packed = pl.pallas_call(
        direction_encode_kernel,
        out_shape=jax.ShapeDtypeStruct((REP, n_pad * NPOS, OUT_CH), jnp.float32),
        grid_spec=pltpu.PrefetchScalarGridSpec(
            num_scalar_prefetch=0,
            grid=(n_pad // bb,),
            in_specs=[
                pl.BlockSpec((rows, KAUG), lambda i: (i, 0)),
                pl.BlockSpec((REP, rows, OUT_CH), lambda i: (0, i, 0)),
                # constant block index -> fetched once, stays VMEM-resident
                pl.BlockSpec((KAUG, OUT_CH), lambda i: (0, 0)),
            ],
            out_specs=pl.BlockSpec((REP, rows, OUT_CH), lambda i: (0, i, 0)),
        ),
        compiler_params=pltpu.CompilerParams(
            dimension_semantics=("parallel",)),
    )(patches, xp, wb)

    # ---- unpack (3, Npad*9, 128) -> (N, 128, 27) and append the zero cls row --
    y = out_packed.reshape(REP, n_pad, NPOS, OUT_CH)[:, :N]    # (3, N, 9, 128)
    y = y.transpose(1, 3, 2, 0).reshape(N, OUT_CH, D_MODEL)    # (N, 128, 27)
    cls = jnp.zeros((N, 1, D_MODEL), y.dtype)
    return jnp.concatenate([y, cls], axis=1)                   # (N, 129, 27)


def reference(x, img, w, b, op_dtype=jnp.float32):
    """Pure-JAX transcription of the PyTorch forward (for verification).

    op_dtype=bfloat16 reproduces the kernel's MXU operand quantization so the
    comparison can be tight (catches layout/ordering bugs); op_dtype=float32 is
    the exact reference (bounds the bf16 quantization error).
    """
    conv = jax.lax.conv_general_dilated(
        img.astype(op_dtype), w.astype(op_dtype),
        window_strides=(STRIDE, STRIDE), padding="VALID",
        dimension_numbers=("NCHW", "OIHW", "NCHW"),
        preferred_element_type=jnp.float32)
    conv = conv + b.astype(op_dtype).astype(jnp.float32)[None, :, None, None]
    e = jnp.broadcast_to(conv[None], (REP,) + conv.shape)      # expand(3, ...)
    e = jnp.transpose(e, (1, 2, 3, 4, 0))                      # (N, 128, 3, 3, 3)
    imgr = e.reshape(-1, e.shape[1], D_MODEL)                  # (N, 128, 27)
    xr = x.reshape(-1, x.shape[1], D_MODEL)
    s = imgr + xr
    cls = jnp.zeros((s.shape[0], 1, D_MODEL), s.dtype)
    return jnp.concatenate([s, cls], axis=1)                   # (N, 129, 27)


if __name__ == "__main__":
    key = jax.random.PRNGKey(0)
    k1, k2, k3, k4, k5 = jax.random.split(key, 5)

    N = 2
    H = W = 29    # smallest spatial size giving a 3x3 conv output (k=9, s=10)

    x   = jax.random.normal(k1, (N, OUT_CH, D_MODEL), jnp.float32)
    x1  = jax.random.normal(k2, (N, OUT_CH, D_MODEL), jnp.float32)   # unused
    img = jax.random.normal(k3, (N, IN_CH, H, W), jnp.float32)

    # Deterministic synthetic conv1 parameters (Conv2d(3, 128, k=9, stride=10)).
    w = jax.random.normal(k4, (OUT_CH, IN_CH, PATCH, PATCH), jnp.float32) * 0.05
    b = jax.random.normal(k5, (OUT_CH,), jnp.float32) * 0.05

    out = jax.block_until_ready(direction_encode(x, x1, img, w, b))
    assert out.shape == (N, SEQ_OUT, D_MODEL), out.shape

    # Tight check against a bf16-quantized reference (same operand rounding as
    # the kernel): any packing / layout / ordering bug shows up here.
    ref_q = reference(x, img, w, b, op_dtype=jnp.bfloat16)
    assert bool(jnp.allclose(out, ref_q, atol=2e-3, rtol=2e-3)), "layout mismatch"

    # Loose check against the exact f32 reference: bounds bf16 quantization.
    ref = reference(x, img, w, b, op_dtype=jnp.float32)
    assert bool(jnp.allclose(out, ref, atol=5e-2, rtol=5e-2)), "mismatch vs f32 reference"

    print("KERNEL_OK")
</pallas_src>

<mosaic_0001>
module attributes {stable_mosaic.version = 11 : i64} {
  func.func @direction_encode_kernel(%arg0: i32, %arg1: memref<144x244xbf16, #tpu.memory_space<vmem>>, %arg2: memref<3x144x128xf32, #tpu.memory_space<vmem>>, %arg3: memref<244x128xbf16, #tpu.memory_space<vmem>>, %arg4: memref<3x144x128xf32, #tpu.memory_space<vmem>>) attributes {dimension_semantics = [#tpu.dimension_semantics<parallel>], iteration_bounds = array<i64: 1>, scalar_prefetch = 0 : i64, scratch_operands = 0 : i64, tpu.core_type = #tpu.core_type<tc>, window_params = [{transform_indices = @transform_0, window_bounds = array<i64: 144, 244>}, {transform_indices = @transform_1, window_bounds = array<i64: 3, 144, 128>}, {pipeline_mode = #tpu.pipeline_mode<synchronous>, transform_indices = @transform_2, window_bounds = array<i64: 244, 128>}, {transform_indices = @transform_3, window_bounds = array<i64: 3, 144, 128>}]} {
    %c0 = arith.constant 0 : index
    %c0_0 = arith.constant 0 : index
    %0 = vector.load %arg1[%c0, %c0_0] : memref<144x244xbf16, #tpu.memory_space<vmem>>, vector<144x244xbf16>
    %c0_1 = arith.constant 0 : index
    %c0_2 = arith.constant 0 : index
    %1 = vector.load %arg3[%c0_1, %c0_2] : memref<244x128xbf16, #tpu.memory_space<vmem>>, vector<244x128xbf16>
    %cst = arith.constant dense<0.000000e+00> : vector<144x128xf32>
    %2 = tpu.matmul %0, %1, %cst {dimension_numbers = #tpu.dot_dimension_numbers<[1], [0], [0], [1], [0, 0, 1, 1], [], []>} : vector<144x244xbf16>, vector<244x128xbf16>, vector<144x128xf32> -> vector<144x128xf32>
    %c0_3 = arith.constant 0 : index
    %c0_4 = arith.constant 0 : index
    %c0_5 = arith.constant 0 : index
    %3 = vector.load %arg2[%c0_3, %c0_4, %c0_5] : memref<3x144x128xf32, #tpu.memory_space<vmem>>, vector<1x144x128xf32>
    %4 = vector.shape_cast %3 : vector<1x144x128xf32> to vector<144x128xf32>
    %5 = arith.addf %2, %4 : vector<144x128xf32>
    %c0_6 = arith.constant 0 : index
    %c0_7 = arith.constant 0 : index
    %c0_8 = arith.constant 0 : index
    %6 = vector.load %arg4[%c0_6, %c0_7, %c0_8] : memref<3x144x128xf32, #tpu.memory_space<vmem>>, vector<1x144x128xf32>
    %7 = vector.shape_cast %6 : vector<1x144x128xf32> to vector<144x128xf32>
    %8 = vector.shape_cast %5 : vector<144x128xf32> to vector<1x144x128xf32>
    tpu.vector_store %arg4[%c0_6, %c0_7, %c0_8], %8 {strides = array<i32>} : memref<3x144x128xf32, #tpu.memory_space<vmem>>, vector<1x144x128xf32>,
    %c1 = arith.constant 1 : index
    %c0_9 = arith.constant 0 : index
    %c0_10 = arith.constant 0 : index
    %9 = vector.load %arg2[%c1, %c0_9, %c0_10] : memref<3x144x128xf32, #tpu.memory_space<vmem>>, vector<1x144x128xf32>
    %10 = vector.shape_cast %9 : vector<1x144x128xf32> to vector<144x128xf32>
    %11 = arith.addf %2, %10 : vector<144x128xf32>
    %c1_11 = arith.constant 1 : index
    %c0_12 = arith.constant 0 : index
    %c0_13 = arith.constant 0 : index
    %12 = vector.load %arg4[%c1_11, %c0_12, %c0_13] : memref<3x144x128xf32, #tpu.memory_space<vmem>>, vector<1x144x128xf32>
    %13 = vector.shape_cast %12 : vector<1x144x128xf32> to vector<144x128xf32>
    %14 = vector.shape_cast %11 : vector<144x128xf32> to vector<1x144x128xf32>
    tpu.vector_store %arg4[%c1_11, %c0_12, %c0_13], %14 {strides = array<i32>} : memref<3x144x128xf32, #tpu.memory_space<vmem>>, vector<1x144x128xf32>,
    %c2 = arith.constant 2 : index
    %c0_14 = arith.constant 0 : index
    %c0_15 = arith.constant 0 : index
    %15 = vector.load %arg2[%c2, %c0_14, %c0_15] : memref<3x144x128xf32, #tpu.memory_space<vmem>>, vector<1x144x128xf32>
    %16 = vector.shape_cast %15 : vector<1x144x128xf32> to vector<144x128xf32>
    %17 = arith.addf %2, %16 : vector<144x128xf32>
    %c2_16 = arith.constant 2 : index
    %c0_17 = arith.constant 0 : index
    %c0_18 = arith.constant 0 : index
    %18 = vector.load %arg4[%c2_16, %c0_17, %c0_18] : memref<3x144x128xf32, #tpu.memory_space<vmem>>, vector<1x144x128xf32>
    %19 = vector.shape_cast %18 : vector<1x144x128xf32> to vector<144x128xf32>
    %20 = vector.shape_cast %17 : vector<144x128xf32> to vector<1x144x128xf32>
    tpu.vector_store %arg4[%c2_16, %c0_17, %c0_18], %20 {strides = array<i32>} : memref<3x144x128xf32, #tpu.memory_space<vmem>>, vector<1x144x128xf32>,
    return
  }
  func.func @transform_0(%arg0: i32) -> (i32, i32) {
    %c0_i32 = arith.constant 0 : i32
    %c0_i32_0 = arith.constant 0 : i32
    return %arg0, %c0_i32 : i32, i32
  }
  func.func @transform_1(%arg0: i32) -> (i32, i32, i32) {
    %c0_i32 = arith.constant 0 : i32
    %c0_i32_0 = arith.constant 0 : i32
    %c0_i32_1 = arith.constant 0 : i32
    return %c0_i32, %arg0, %c0_i32_0 : i32, i32, i32
  }
  func.func @transform_2(%arg0: i32) -> (i32, i32) {
    %c0_i32 = arith.constant 0 : i32
    %c0_i32_0 = arith.constant 0 : i32
    %c0_i32_1 = arith.constant 0 : i32
    return %c0_i32, %c0_i32_0 : i32, i32
  }
  func.func @transform_3(%arg0: i32) -> (i32, i32, i32) {
    %c0_i32 = arith.constant 0 : i32
    %c0_i32_0 = arith.constant 0 : i32
    %c0_i32_1 = arith.constant 0 : i32
    return %c0_i32, %arg0, %c0_i32_0 : i32, i32, i32
  }
}

</mosaic_0001>

<llo_original>
// kernel: direction_encode.1
$region0: #{direction_encode.1}
  #allocation0 [shape = 'u32[]', space=smem, size = 0x4, offset = 0x4, fixed_abs, tag = 'smem constant byte address 0x4 - core index']
  #allocation1 [shape = 'u32[144,128]{1,0:T(1,128)}', space=vmem, size = 0x12000, scoped, tag = 'internal scratch']
  %s0 = inlined_call_operand.vmem [shape: bf16[144,244], index: 0, kind: input, shape index: {}]
  %s1 = inlined_call_operand.vmem [shape: f32[3,144,128], index: 1, kind: input, shape index: {}]
  %s2 = inlined_call_operand.vmem [shape: bf16[244,128], index: 2, kind: input, shape index: {}]
  %s3 = inlined_call_operand.vmem [shape: f32[3,144,128], index: 3, kind: output, shape index: {}]
  %s4 = sld [smem:[#allocation0]]
  $region22: #{direction_encode.1} parent=0
    _
  %s6 = ssub.s32 1, %s4
  %s7 = scalar_select 0, %s6, %s4
  // Predicated region
  $region2: #{direction_encode.1} parent=0 // pred_check
    _
  $region3: #{direction_encode.1} parent=0 // pred_check_branch
    %9 = sbr.rel (0) target = $region5
  $region4: #{direction_encode.1} parent=0 // pred_region
    _
  $region5: #{direction_encode.1} parent=0 // pred_fallthru
    _
  // Predicated region
  $region6: #{direction_encode.1} parent=0 // pred_check
    _
  $region7: #{direction_encode.1} parent=0 // pred_check_branch
    %11 = sbr.rel (0) target = $region9
  $region8: #{direction_encode.1} parent=0 // pred_region
    _
  $region9: #{direction_encode.1} parent=0 // pred_fallthru
    _
  // Predicated region
  $region10: #{direction_encode.1} parent=0 // pred_check
    _
  $region11: #{direction_encode.1} parent=0 // pred_check_branch
    %13 = sbr.rel (0) target = $region13
  $region12: #{direction_encode.1} parent=0 // pred_region
    _
  $region13: #{direction_encode.1} parent=0 // pred_fallthru
    _
  %v15 = vld [vmem:[%s0] sm:$0xff]
  %v16 = vld [vmem:[%s0 + $0x8] sm:$0xff]
  %v17 = vld [vmem:[%s0 + $0x10] sm:$0xff]
  %v18 = vld [vmem:[%s0 + $0x18] sm:$0xff]
  %v19 = vld [vmem:[%s0 + $0x20] sm:$0xff]
  %v20 = vld [vmem:[%s0 + $0x28] sm:$0xff]
  %v21 = vld [vmem:[%s0 + $0x30] sm:$0xff]
  %v22 = vld [vmem:[%s0 + $0x38] sm:$0xff]
  %v23 = vld [vmem:[%s0 + $0x40] sm:$0xff]
  %v24 = vld [vmem:[%s0 + $0x48] sm:$0xff]
  %v25 = vld [vmem:[%s0 + $0x50] sm:$0xff]
  %v26 = vld [vmem:[%s0 + $0x58] sm:$0xff]
  %v27 = vld [vmem:[%s0 + $0x60] sm:$0xff]
  %v28 = vld [vmem:[%s0 + $0x68] sm:$0xff]
  %v29 = vld [vmem:[%s0 + $0x70] sm:$0xff]
  %v30 = vld [vmem:[%s0 + $0x78] sm:$0xff]
  %v31 = vld [vmem:[%s0 + $0x80] sm:$0xff]
  %v32 = vld [vmem:[%s0 + $0x88] sm:$0xff]
  %v33 = vld [vmem:[%s2] sm:$0xf]
  %v34 = vld [vmem:[%s2 + $0x4] sm:$0xf]
  %v35 = vld [vmem:[%s2 + $0x8] sm:$0xf]
  %v36 = vld [vmem:[%s2 + $0xc] sm:$0xf]
  %v37 = vld [vmem:[%s2 + $0x10] sm:$0xf]
  %v38 = vld [vmem:[%s2 + $0x14] sm:$0xf]
  %v39 = vld [vmem:[%s2 + $0x18] sm:$0xf]
  %v40 = vld [vmem:[%s2 + $0x1c] sm:$0xf]
  %v41 = vld [vmem:[%s2 + $0x20] sm:$0xf]
  %v42 = vld [vmem:[%s2 + $0x24] sm:$0xf]
  %v43 = vld [vmem:[%s2 + $0x28] sm:$0xf]
  %v44 = vld [vmem:[%s2 + $0x2c] sm:$0xf]
  %v45 = vld [vmem:[%s2 + $0x30] sm:$0xf]
  %v46 = vld [vmem:[%s2 + $0x34] sm:$0xf]
  %v47 = vld [vmem:[%s2 + $0x38] sm:$0xf]
  %v48 = vld [vmem:[%s2 + $0x3c] sm:$0xf]
  %v49 = vld [vmem:[%s2 + $0x40] sm:$0xf]
  %v50 = vld [vmem:[%s2 + $0x44] sm:$0xf]
  %v51 = vld [vmem:[%s2 + $0x48] sm:$0xf]
  %v52 = vld [vmem:[%s2 + $0x4c] sm:$0xf]
  %v53 = vld [vmem:[%s2 + $0x50] sm:$0xf]
  %v54 = vld [vmem:[%s2 + $0x54] sm:$0xf]
  %v55 = vld [vmem:[%s2 + $0x58] sm:$0xf]
  %v56 = vld [vmem:[%s2 + $0x5c] sm:$0xf]
  %v57 = vld [vmem:[%s2 + $0x60] sm:$0xf]
  %v58 = vld [vmem:[%s2 + $0x64] sm:$0xf]
  %v59 = vld [vmem:[%s2 + $0x68] sm:$0xf]
  %v60 = vld [vmem:[%s2 + $0x6c] sm:$0xf]
  %v61 = vld [vmem:[%s2 + $0x70] sm:$0xf]
  %v62 = vld [vmem:[%s2 + $0x74] sm:$0xf]
  %v63 = vld [vmem:[%s2 + $0x78] sm:$0x3]
  %v82 = vunpack.c.l.b16 %v15
  %v83 = vunpack.c.h.b16 %v15
  %v84 = vunpack.c.l.b16 %v16
  %v85 = vunpack.c.h.b16 %v16
  %v86 = vunpack.c.l.b16 %v17
  %v87 = vunpack.c.h.b16 %v17
  %v88 = vunpack.c.l.b16 %v18
  %v89 = vunpack.c.h.b16 %v18
  %v90 = vunpack.c.l.b16 %v19
  %v91 = vunpack.c.h.b16 %v19
  %v92 = vunpack.c.l.b16 %v20
  %v93 = vunpack.c.h.b16 %v20
  %v94 = vunpack.c.l.b16 %v21
  %v95 = vunpack.c.h.b16 %v21
  %v96 = vunpack.c.l.b16 %v22
  %v97 = vunpack.c.h.b16 %v22
  %v98 = vunpack.c.l.b16 %v23
  %v99 = vunpack.c.h.b16 %v23
  %v100 = vunpack.c.l.b16 %v24
  %v101 = vunpack.c.h.b16 %v24
  %v102 = vunpack.c.l.b16 %v25
  %v103 = vunpack.c.h.b16 %v25
  %v104 = vunpack.c.l.b16 %v26
  %v105 = vunpack.c.h.b16 %v26
  %v106 = vunpack.c.l.b16 %v27
  %v107 = vunpack.c.h.b16 %v27
  %v108 = vunpack.c.l.b16 %v28
  %v109 = vunpack.c.h.b16 %v28
  %v110 = vunpack.c.l.b16 %v29
  %v111 = vunpack.c.h.b16 %v29
  %v112 = vunpack.c.l.b16 %v30
  %v113 = vunpack.c.h.b16 %v30
  %v114 = vunpack.c.l.b16 %v31
  %v115 = vunpack.c.h.b16 %v31
  %v116 = vunpack.c.l.b16 %v32
  %v117 = vunpack.c.h.b16 %v32
  %v118 = vpack.c.b16 %v84, %v82
  %v119 = vpack.c.b16 %v85, %v83
  %v120 = vpack.c.b16 %v88, %v86
  %v121 = vpack.c.b16 %v89, %v87
  %v122 = vpack.c.b16 %v92, %v90
  %v123 = vpack.c.b16 %v93, %v91
  %v124 = vpack.c.b16 %v96, %v94
  %v125 = vpack.c.b16 %v97, %v95
  %v126 = vpack.c.b16 %v100, %v98
  %v127 = vpack.c.b16 %v101, %v99
  %v128 = vpack.c.b16 %v104, %v102
  %v129 = vpack.c.b16 %v105, %v103
  %v130 = vpack.c.b16 %v108, %v106
  %v131 = vpack.c.b16 %v109, %v107
  %v132 = vpack.c.b16 %v112, %v110
  %v133 = vpack.c.b16 %v113, %v111
  %v134 = vpack.c.b16 %v116, %v114
  %v135 = vpack.c.b16 %v117, %v115
  %v176 = vunpack.c.l.b16 %v33
  %v177 = vunpack.c.l.b16 %v34
  %v178 = vunpack.c.l.b16 %v35
  %v179 = vunpack.c.l.b16 %v36
  %v180 = vunpack.c.l.b16 %v37
  %v181 = vunpack.c.l.b16 %v38
  %v182 = vunpack.c.l.b16 %v39
  %v183 = vunpack.c.l.b16 %v40
  %v184 = vunpack.c.l.b16 %v41
  %v185 = vunpack.c.l.b16 %v42
  %v186 = vunpack.c.l.b16 %v43
  %v187 = vunpack.c.l.b16 %v44
  %v188 = vunpack.c.l.b16 %v45
  %v189 = vunpack.c.l.b16 %v46
  %v190 = vunpack.c.l.b16 %v47
  %v191 = vunpack.c.l.b16 %v48
  %v192 = vunpack.c.l.b16 %v49
  %v193 = vunpack.c.l.b16 %v50
  %v194 = vunpack.c.l.b16 %v51
  %v195 = vunpack.c.l.b16 %v52
  %v196 = vunpack.c.l.b16 %v53
  %v197 = vunpack.c.l.b16 %v54
  %v198 = vunpack.c.l.b16 %v55
  %v199 = vunpack.c.l.b16 %v56
  %v200 = vunpack.c.l.b16 %v57
  %v201 = vunpack.c.l.b16 %v58
  %v202 = vunpack.c.l.b16 %v59
  %v203 = vunpack.c.l.b16 %v60
  %v204 = vunpack.c.l.b16 %v61
  %v205 = vunpack.c.l.b16 %v62
  %v206 = vunpack.c.l.b16 %v63
  %v207 = vpack.c.b16 %v177, %v176
  %v208 = vpack.c.b16 %v179, %v178
  %v209 = vpack.c.b16 %v181, %v180
  %v210 = vpack.c.b16 %v183, %v182
  %v211 = vpack.c.b16 %v185, %v184
  %v212 = vpack.c.b16 %v187, %v186
  %v213 = vpack.c.b16 %v189, %v188
  %v214 = vpack.c.b16 %v191, %v190
  %v215 = vpack.c.b16 %v193, %v192
  %v216 = vpack.c.b16 %v195, %v194
  %v217 = vpack.c.b16 %v197, %v196
  %v218 = vpack.c.b16 %v199, %v198
  %v219 = vpack.c.b16 %v201, %v200
  %v220 = vpack.c.b16 %v203, %v202
  %v221 = vpack.c.b16 %v205, %v204
  %v222 = vpack.c.b16 %v206, %v206
  %vm238 = vcmask 949248
  %v240 = vsel %vm238, %v119, 0
  %v243 = vsel %vm238, %v121, 0
  %v246 = vsel %vm238, %v123, 0
  %v249 = vsel %vm238, %v125, 0
  %v252 = vsel %vm238, %v127, 0
  %v255 = vsel %vm238, %v129, 0
  %v258 = vsel %vm238, %v131, 0
  %v261 = vsel %vm238, %v133, 0
  %v264 = vsel %vm238, %v135, 0
  %vm266 = vcmask 1041408
  %v268 = vsel %vm266, %v222, 0
  %270 = vmatprep.subr.bf16.mxu0 0
  %271 = vmatpush1.bf16.msra.mxu0 %v207
  %272 = vmatprep.subr.bf16.mxu0 0
  %273 = vmatpush1.bf16.msra.mxu0 %v208
  %274 = vmatprep.subr.bf16.mxu0 0
  %275 = vmatpush1.bf16.msra.mxu0 %v209
  %276 = vmatprep.subr.bf16.mxu0 0
  %277 = vmatpush1.bf16.msra.mxu0 %v210
  %278 = vmatprep.subr.bf16.mxu0 0
  %279 = vmatpush1.bf16.msra.mxu0 %v211
  %280 = vmatprep.subr.bf16.mxu0 0
  %281 = vmatpush1.bf16.msra.mxu0 %v212
  %282 = vmatprep.subr.bf16.mxu0 0
  %283 = vmatpush1.bf16.msra.mxu0 %v213
  %284 = vmatprep.subr.bf16.mxu0 0
  %285 = vmatpush1.bf16.msra.mxu0 %v214
  %286 = vmatprep.subr.bf16.mxu0 0
  %287 = vmatpush1.bf16.msra.mxu0 %v215
  %288 = vmatprep.subr.bf16.mxu0 0
  %289 = vmatpush1.bf16.msra.mxu0 %v216
  %290 = vmatprep.subr.bf16.mxu0 0
  %291 = vmatpush1.bf16.msra.mxu0 %v217
  %292 = vmatprep.subr.bf16.mxu0 0
  %293 = vmatpush1.bf16.msra.mxu0 %v218
  %294 = vmatprep.subr.bf16.mxu0 0
  %295 = vmatpush1.bf16.msra.mxu0 %v219
  %296 = vmatprep.subr.bf16.mxu0 0
  %297 = vmatpush1.bf16.msra.mxu0 %v220
  %298 = vmatprep.subr.bf16.mxu0 0
  %299 = vmatpush1.bf16.msra.mxu0 %v221
  %300 = vmatprep.subr.bf16.mxu0 0
  %301 = vmatpush1.bf16.msra.mxu0 %v268
  %302 = vmatprep.mubr.bf16.mxu0 %v240
  %303 = vmatmul.mubr.bf16.gmra.mrb[0].mxu0 %v118
  %v304 = vpop.f32.mrb[0].mxu0
  %v305 = vadd.f32 0.0, %v304
  %v306 = vpop.f32.mrb[0].mxu0
  %v307 = vpop.f32.mrb[0].mxu0
  %v308 = vadd.f32 0.0, %v307
  %v309 = vpop.f32.mrb[0].mxu0
  %310 = vmatprep.mubr.bf16.mxu0 %v243
  %311 = vmatmul.mubr.bf16.gmra.mrb[0].mxu0 %v120
  %v312 = vpop.f32.mrb[0].mxu0
  %v313 = vadd.f32 0.0, %v312
  %v314 = vpop.f32.mrb[0].mxu0
  %v315 = vpop.f32.mrb[0].mxu0
  %v316 = vadd.f32 0.0, %v315
  %v317 = vpop.f32.mrb[0].mxu0
  %318 = vmatprep.mubr.bf16.mxu0 %v246
  %319 = vmatmul.mubr.bf16.gmra.mrb[0].mxu0 %v122
  %v320 = vpop.f32.mrb[0].mxu0
  %v321 = vadd.f32 0.0, %v320
  %v322 = vpop.f32.mrb[0].mxu0
  %v323 = vpop.f32.mrb[0].mxu0
  %v324 = vadd.f32 0.0, %v323
  %v325 = vpop.f32.mrb[0].mxu0
  %326 = vmatprep.mubr.bf16.mxu0 %v249
  %327 = vmatmul.mubr.bf16.gmra.mrb[0].mxu0 %v124
  %v328 = vpop.f32.mrb[0].mxu0
  %v329 = vadd.f32 0.0, %v328
  %v330 = vpop.f32.mrb[0].mxu0
  %v331 = vpop.f32.mrb[0].mxu0
  %v332 = vadd.f32 0.0, %v331
  %v333 = vpop.f32.mrb[0].mxu0
  %334 = vmatprep.mubr.bf16.mxu0 %v252
  %335 = vmatmul.mubr.bf16.gmra.mrb[0].mxu0 %v126
  %v336 = vpop.f32.mrb[0].mxu0
  %v337 = vadd.f32 0.0, %v336
  %v338 = vpop.f32.mrb[0].mxu0
  %v339 = vpop.f32.mrb[0].mxu0
  %v340 = vadd.f32 0.0, %v339
  %v341 = vpop.f32.mrb[0].mxu0
  %342 = vmatprep.mubr.bf16.mxu0 %v255
  %343 = vmatmul.mubr.bf16.gmra.mrb[0].mxu0 %v128
  %v344 = vpop.f32.mrb[0].mxu0
  %v345 = vadd.f32 0.0, %v344
  %v346 = vpop.f32.mrb[0].mxu0
  %v347 = vpop.f32.mrb[0].mxu0
  %v348 = vadd.f32 0.0, %v347
  %v349 = vpop.f32.mrb[0].mxu0
  %350 = vmatprep.mubr.bf16.mxu0 %v258
  %351 = vmatmul.mubr.bf16.gmra.mrb[0].mxu0 %v130
  %v352 = vpop.f32.mrb[0].mxu0
  %v353 = vadd.f32 0.0, %v352
  %v354 = vpop.f32.mrb[0].mxu0
  %v355 = vpop.f32.mrb[0].mxu0
  %v356 = vadd.f32 0.0, %v355
  %v357 = vpop.f32.mrb[0].mxu0
  %358 = vmatprep.mubr.bf16.mxu0 %v261
  %359 = vmatmul.mubr.bf16.gmra.mrb[0].mxu0 %v132
  %v360 = vpop.f32.mrb[0].mxu0
  %v361 = vadd.f32 0.0, %v360
  %v362 = vpop.f32.mrb[0].mxu0
  %v363 = vpop.f32.mrb[0].mxu0
  %v364 = vadd.f32 0.0, %v363
  %v365 = vpop.f32.mrb[0].mxu0
  %366 = vmatprep.mubr.bf16.mxu0 %v264
  %367 = vmatmul.mubr.bf16.gmra.mrb[0].mxu0 %v134
  %v368 = vpop.f32.mrb[0].mxu0
  %v369 = vadd.f32 0.0, %v368
  %v370 = vpop.f32.mrb[0].mxu0
  %v371 = vpop.f32.mrb[0].mxu0
  %v372 = vadd.f32 0.0, %v371
  %v373 = vpop.f32.mrb[0].mxu0
  %374 = vdwg.mxu0
  %v375 = vld [vmem:[%s1] sm:$0xff]
  %v376 = vld [vmem:[%s1 + $0x8] sm:$0xff]
  %v377 = vld [vmem:[%s1 + $0x10] sm:$0xff]
  %v378 = vld [vmem:[%s1 + $0x18] sm:$0xff]
  %v379 = vld [vmem:[%s1 + $0x20] sm:$0xff]
  %v380 = vld [vmem:[%s1 + $0x28] sm:$0xff]
  %v381 = vld [vmem:[%s1 + $0x30] sm:$0xff]
  %v382 = vld [vmem:[%s1 + $0x38] sm:$0xff]
  %v383 = vld [vmem:[%s1 + $0x40] sm:$0xff]
  %v384 = vld [vmem:[%s1 + $0x48] sm:$0xff]
  %v385 = vld [vmem:[%s1 + $0x50] sm:$0xff]
  %v386 = vld [vmem:[%s1 + $0x58] sm:$0xff]
  %v387 = vld [vmem:[%s1 + $0x60] sm:$0xff]
  %v388 = vld [vmem:[%s1 + $0x68] sm:$0xff]
  %v389 = vld [vmem:[%s1 + $0x70] sm:$0xff]
  %v390 = vld [vmem:[%s1 + $0x78] sm:$0xff]
  %v391 = vld [vmem:[%s1 + $0x80] sm:$0xff]
  %v392 = vld [vmem:[%s1 + $0x88] sm:$0xff]
  %v393 = vadd.f32 %v305, %v375
  %v394 = vadd.f32 %v308, %v376
  %v395 = vadd.f32 %v313, %v377
  %v396 = vadd.f32 %v316, %v378
  %v397 = vadd.f32 %v321, %v379
  %v398 = vadd.f32 %v324, %v380
  %v399 = vadd.f32 %v329, %v381
  %v400 = vadd.f32 %v332, %v382
  %v401 = vadd.f32 %v337, %v383
  %v402 = vadd.f32 %v340, %v384
  %v403 = vadd.f32 %v345, %v385
  %v404 = vadd.f32 %v348, %v386
  %v405 = vadd.f32 %v353, %v387
  %v406 = vadd.f32 %v356, %v388
  %v407 = vadd.f32 %v361, %v389
  %v408 = vadd.f32 %v364, %v390
  %v409 = vadd.f32 %v369, %v391
  %v410 = vadd.f32 %v372, %v392
  %411 = vst [vmem:[%s3] sm:$0xff] %v393
  %412 = vst [vmem:[%s3 + $0x8] sm:$0xff] %v394
  %413 = vst [vmem:[%s3 + $0x10] sm:$0xff] %v395
  %414 = vst [vmem:[%s3 + $0x18] sm:$0xff] %v396
  %415 = vst [vmem:[%s3 + $0x20] sm:$0xff] %v397
  %416 = vst [vmem:[%s3 + $0x28] sm:$0xff] %v398
  %417 = vst [vmem:[%s3 + $0x30] sm:$0xff] %v399
  %418 = vst [vmem:[%s3 + $0x38] sm:$0xff] %v400
  %419 = vst [vmem:[%s3 + $0x40] sm:$0xff] %v401
  %420 = vst [vmem:[%s3 + $0x48] sm:$0xff] %v402
  %421 = vst [vmem:[%s3 + $0x50] sm:$0xff] %v403
  %422 = vst [vmem:[%s3 + $0x58] sm:$0xff] %v404
  %423 = vst [vmem:[%s3 + $0x60] sm:$0xff] %v405
  %424 = vst [vmem:[%s3 + $0x68] sm:$0xff] %v406
  %425 = vst [vmem:[%s3 + $0x70] sm:$0xff] %v407
  %426 = vst [vmem:[%s3 + $0x78] sm:$0xff] %v408
  %427 = vst [vmem:[%s3 + $0x80] sm:$0xff] %v409
  %428 = vst [vmem:[%s3 + $0x88] sm:$0xff] %v410
  %s429 = scalar_lea.vmem %s1, 144
  %v430 = vld [vmem:[%s429] sm:$0xff]
  %v431 = vld [vmem:[%s429 + $0x8] sm:$0xff]
  %v432 = vld [vmem:[%s429 + $0x10] sm:$0xff]
  %v433 = vld [vmem:[%s429 + $0x18] sm:$0xff]
  %v434 = vld [vmem:[%s429 + $0x20] sm:$0xff]
  %v435 = vld [vmem:[%s429 + $0x28] sm:$0xff]
  %v436 = vld [vmem:[%s429 + $0x30] sm:$0xff]
  %v437 = vld [vmem:[%s429 + $0x38] sm:$0xff]
  %v438 = vld [vmem:[%s429 + $0x40] sm:$0xff]
  %v439 = vld [vmem:[%s429 + $0x48] sm:$0xff]
  %v440 = vld [vmem:[%s429 + $0x50] sm:$0xff]
  %v441 = vld [vmem:[%s429 + $0x58] sm:$0xff]
  %v442 = vld [vmem:[%s429 + $0x60] sm:$0xff]
  %v443 = vld [vmem:[%s429 + $0x68] sm:$0xff]
  %v444 = vld [vmem:[%s429 + $0x70] sm:$0xff]
  %v445 = vld [vmem:[%s429 + $0x78] sm:$0xff]
  %v446 = vld [vmem:[%s429 + $0x80] sm:$0xff]
  %v447 = vld [vmem:[%s429 + $0x88] sm:$0xff]
  %v448 = vadd.f32 %v305, %v430
  %v449 = vadd.f32 %v308, %v431
  %v450 = vadd.f32 %v313, %v432
  %v451 = vadd.f32 %v316, %v433
  %v452 = vadd.f32 %v321, %v434
  %v453 = vadd.f32 %v324, %v435
  %v454 = vadd.f32 %v329, %v436
  %v455 = vadd.f32 %v332, %v437
  %v456 = vadd.f32 %v337, %v438
  %v457 = vadd.f32 %v340, %v439
  %v458 = vadd.f32 %v345, %v440
  %v459 = vadd.f32 %v348, %v441
  %v460 = vadd.f32 %v353, %v442
  %v461 = vadd.f32 %v356, %v443
  %v462 = vadd.f32 %v361, %v444
  %v463 = vadd.f32 %v364, %v445
  %v464 = vadd.f32 %v369, %v446
  %v465 = vadd.f32 %v372, %v447
  %s466 = scalar_lea.vmem %s3, 144
  %467 = vst [vmem:[%s466] sm:$0xff] %v448
  %468 = vst [vmem:[%s466 + $0x8] sm:$0xff] %v449
  %469 = vst [vmem:[%s466 + $0x10] sm:$0xff] %v450
  %470 = vst [vmem:[%s466 + $0x18] sm:$0xff] %v451
  %471 = vst [vmem:[%s466 + $0x20] sm:$0xff] %v452
  %472 = vst [vmem:[%s466 + $0x28] sm:$0xff] %v453
  %473 = vst [vmem:[%s466 + $0x30] sm:$0xff] %v454
  %474 = vst [vmem:[%s466 + $0x38] sm:$0xff] %v455
  %475 = vst [vmem:[%s466 + $0x40] sm:$0xff] %v456
  %476 = vst [vmem:[%s466 + $0x48] sm:$0xff] %v457
  %477 = vst [vmem:[%s466 + $0x50] sm:$0xff] %v458
  %478 = vst [vmem:[%s466 + $0x58] sm:$0xff] %v459
  %479 = vst [vmem:[%s466 + $0x60] sm:$0xff] %v460
  %480 = vst [vmem:[%s466 + $0x68] sm:$0xff] %v461
  %481 = vst [vmem:[%s466 + $0x70] sm:$0xff] %v462
  %482 = vst [vmem:[%s466 + $0x78] sm:$0xff] %v463
  %483 = vst [vmem:[%s466 + $0x80] sm:$0xff] %v464
  %484 = vst [vmem:[%s466 + $0x88] sm:$0xff] %v465
  %s485 = scalar_lea.vmem %s1, 288
  %v486 = vld [vmem:[%s485] sm:$0xff]
  %v487 = vld [vmem:[%s485 + $0x8] sm:$0xff]
  %v488 = vld [vmem:[%s485 + $0x10] sm:$0xff]
  %v489 = vld [vmem:[%s485 + $0x18] sm:$0xff]
  %v490 = vld [vmem:[%s485 + $0x20] sm:$0xff]
  %v491 = vld [vmem:[%s485 + $0x28] sm:$0xff]
  %v492 = vld [vmem:[%s485 + $0x30] sm:$0xff]
  %v493 = vld [vmem:[%s485 + $0x38] sm:$0xff]
  %v494 = vld [vmem:[%s485 + $0x40] sm:$0xff]
  %v495 = vld [vmem:[%s485 + $0x48] sm:$0xff]
  %v496 = vld [vmem:[%s485 + $0x50] sm:$0xff]
  %v497 = vld [vmem:[%s485 + $0x58] sm:$0xff]
  %v498 = vld [vmem:[%s485 + $0x60] sm:$0xff]
  %v499 = vld [vmem:[%s485 + $0x68] sm:$0xff]
  %v500 = vld [vmem:[%s485 + $0x70] sm:$0xff]
  %v501 = vld [vmem:[%s485 + $0x78] sm:$0xff]
  %v502 = vld [vmem:[%s485 + $0x80] sm:$0xff]
  %v503 = vld [vmem:[%s485 + $0x88] sm:$0xff]
  %v504 = vadd.f32 %v305, %v486
  %v505 = vadd.f32 %v308, %v487
  %v506 = vadd.f32 %v313, %v488
  %v507 = vadd.f32 %v316, %v489
  %v508 = vadd.f32 %v321, %v490
  %v509 = vadd.f32 %v324, %v491
  %v510 = vadd.f32 %v329, %v492
  %v511 = vadd.f32 %v332, %v493
  %v512 = vadd.f32 %v337, %v494
  %v513 = vadd.f32 %v340, %v495
  %v514 = vadd.f32 %v345, %v496
  %v515 = vadd.f32 %v348, %v497
  %v516 = vadd.f32 %v353, %v498
  %v517 = vadd.f32 %v356, %v499
  %v518 = vadd.f32 %v361, %v500
  %v519 = vadd.f32 %v364, %v501
  %v520 = vadd.f32 %v369, %v502
  %v521 = vadd.f32 %v372, %v503
  %s522 = scalar_lea.vmem %s3, 288
  %523 = vst [vmem:[%s522] sm:$0xff] %v504
  %524 = vst [vmem:[%s522 + $0x8] sm:$0xff] %v505
  %525 = vst [vmem:[%s522 + $0x10] sm:$0xff] %v506
  %526 = vst [vmem:[%s522 + $0x18] sm:$0xff] %v507
  %527 = vst [vmem:[%s522 + $0x20] sm:$0xff] %v508
  %528 = vst [vmem:[%s522 + $0x28] sm:$0xff] %v509
  %529 = vst [vmem:[%s522 + $0x30] sm:$0xff] %v510
  %530 = vst [vmem:[%s522 + $0x38] sm:$0xff] %v511
  %531 = vst [vmem:[%s522 + $0x40] sm:$0xff] %v512
  %532 = vst [vmem:[%s522 + $0x48] sm:$0xff] %v513
  %533 = vst [vmem:[%s522 + $0x50] sm:$0xff] %v514
  %534 = vst [vmem:[%s522 + $0x58] sm:$0xff] %v515
  %535 = vst [vmem:[%s522 + $0x60] sm:$0xff] %v516
  %536 = vst [vmem:[%s522 + $0x68] sm:$0xff] %v517
  %537 = vst [vmem:[%s522 + $0x70] sm:$0xff] %v518
  %538 = vst [vmem:[%s522 + $0x78] sm:$0xff] %v519
  %539 = vst [vmem:[%s522 + $0x80] sm:$0xff] %v520
  %540 = vst [vmem:[%s522 + $0x88] sm:$0xff] %v521
  // Predicated region
  $region14: #{direction_encode.1} parent=0 // pred_check
    _
  $region15: #{direction_encode.1} parent=0 // pred_check_branch
    %542 = sbr.rel (0) target = $region17
  $region16: #{direction_encode.1} parent=0 // pred_region
    _
  $region17: #{direction_encode.1} parent=0 // pred_fallthru
    _
  // Predicated region
  $region18: #{direction_encode.1} parent=0 // pred_check
    _
  $region19: #{direction_encode.1} parent=0 // pred_check_branch
    %544 = sbr.rel (0) target = $region21
  $region20: #{direction_encode.1} parent=0 // pred_region
    _
  $region21: #{direction_encode.1} parent=0 // pred_fallthru
    _

</llo_original>
